<compile_context>
chip_gen: v6e
topology: v6e:2x2x1
jax: 0.10.0
libtpu: 0.0.40
codegen_flags: <defaults>
</compile_context>

<pallas_src>
import functools

import jax
import jax.numpy as jnp
from jax import lax
from jax.experimental import pallas as pl
from jax.experimental.pallas import tpu as pltpu


def _contrastive_loss_kernel(q1_ref, q2_ref, lab_ref, out_ref, *,
                             margin, batch, block_b, needs_mask):
    q1 = q1_ref[...].astype(jnp.float32)      # (TB, D)
    q2 = q2_ref[...].astype(jnp.float32)      # (TB, D)
    lab = lab_ref[...].astype(jnp.float32)    # (TB, 1)

    # Three lane reductions per row; no full-tile normalization.
    # (If bundle dumps ever show VALU/XLU binding for bf16 inputs, these
    # reductions can be offloaded to the idle MXU via a ones-vector matmul.)
    ss1 = jnp.sum(q1 * q1, axis=1, keepdims=True)   # (TB, 1)
    ss2 = jnp.sum(q2 * q2, axis=1, keepdims=True)   # (TB, 1)
    dot = jnp.sum(q1 * q2, axis=1, keepdims=True)   # (TB, 1)

    # Exact PyTorch parity with a 3-rsqrt EUP chain (no sqrt / divide):
    #   max(||q||, 1e-12)                 == sqrt(max(ss, 1e-24))
    #   1 / max(n1*n2*denom_inv, 1e-8)    == rsqrt(max((n1*n2*denom_inv)^2, 1e-16))
    denom_inv = (lax.rsqrt(jnp.maximum(ss1, 1e-24)) *
                 lax.rsqrt(jnp.maximum(ss2, 1e-24)))          # 1/(max(n1,eps)*max(n2,eps))
    ratio = ss1 * ss2 * denom_inv * denom_inv                  # (||q1n||*||q2n||)^2
    cos_sim = dot * denom_inv * lax.rsqrt(jnp.maximum(ratio, 1e-16))

    cos_dist = 1.0 - cos_sim                                   # (TB, 1)
    hinge = jnp.maximum(margin - cos_dist, 0.0)
    losses = 0.5 * (lab * cos_dist * cos_dist
                    + (1.0 - lab) * hinge * hinge)             # (TB, 1)

    if needs_mask:
        # Only emitted when B % block_b != 0: mask padded tail rows so
        # garbage (incl. NaN/Inf) never leaks into the sum.
        row = lax.broadcasted_iota(jnp.int32, losses.shape, 0)
        valid = (pl.program_id(0) * block_b + row) < batch
        losses = jnp.where(valid, losses, 0.0)

    # Per-block partial sum, broadcast into a lane-dense (1,1,128) slot.
    block_sum = jnp.sum(losses)
    out_ref[...] = jnp.full(out_ref.shape, block_sum, dtype=jnp.float32)


def _round_up(x, m):
    return ((x + m - 1) // m) * m


def _vmem_capacity_bytes():
    try:
        info = pltpu.get_tpu_info()
        cap = getattr(info, "vmem_capacity_bytes", None)
        if cap:
            return int(cap)
    except Exception:
        pass
    # Conservative fallback (v7x-sized VMEM) if the query is unavailable.
    return 64 * 1024 * 1024


def contrastive_loss(q1, q2, labels, margin=1.0, block_b=None):
    """q1, q2: (B, D) float arrays (f32 or bf16). labels: (B,). Returns scalar."""
    B, D = q1.shape
    labels2d = labels.reshape(B, 1).astype(jnp.float32)

    itemsize = q1.dtype.itemsize
    widen = max(1, 4 // itemsize)            # f32 -> 1, bf16 -> 2
    row_align = 8 * widen                    # (8,128) f32 tile, (16,128) bf16 tile

    # Generation-aware VMEM budgeting: ~3/4 of physical VMEM as the scoped
    # limit (48 MiB on v7x's 64 MiB, 96 MiB on v5e/v6e's 128 MiB), and a
    # per-feature-block budget that accounts for 2 inputs x 2 pipeline buffers
    # plus the f32-widened (TB, D) temporaries.
    vmem_cap = _vmem_capacity_bytes()
    vmem_limit = int(min(vmem_cap * 3 // 4, 100 * 1024 * 1024))
    per_block_budget = vmem_limit // (4 + 3 * widen + 1)

    if block_b is None:
        bytes_per_row = max(1, D * itemsize)
        max_rows = max(row_align, per_block_budget // bytes_per_row)
        max_rows = (max_rows // row_align) * row_align
        block_b = min(max_rows, _round_up(B, row_align))
    block_b = max(row_align, (block_b // row_align) * row_align)

    num_blocks = -(-B // block_b)
    grid = (num_blocks,)
    needs_mask = (B % block_b) != 0

    kernel = functools.partial(
        _contrastive_loss_kernel, margin=float(margin), batch=B,
        block_b=block_b, needs_mask=needs_mask)

    cost = pl.CostEstimate(
        flops=int(6 * B * D + 16 * B),
        transcendentals=int(3 * B),
        bytes_accessed=int(2 * B * D * itemsize + 4 * B + num_blocks * 512),
    )

    partials = pl.pallas_call(
        kernel,
        out_shape=jax.ShapeDtypeStruct((num_blocks, 1, 128), jnp.float32),
        grid=grid,
        in_specs=[
            pl.BlockSpec((block_b, D), lambda i: (i, 0)),
            pl.BlockSpec((block_b, D), lambda i: (i, 0)),
            pl.BlockSpec((block_b, 1), lambda i: (i, 0)),
        ],
        # Each grid step writes its own lane-dense partial-sum slot, so the
        # batch axis can be sharded across both TensorCores on v7x.
        out_specs=pl.BlockSpec((1, 1, 128), lambda i: (i, 0, 0)),
        compiler_params=pltpu.CompilerParams(
            dimension_semantics=("parallel",),
            vmem_limit_bytes=vmem_limit),
        cost_estimate=cost,
    )(q1, q2, labels2d)

    # Final reduction over the (few) per-block partial sums + mean over true B.
    return jnp.sum(partials[:, 0, 0]) / jnp.float32(B)


def _reference(q1, q2, labels, margin=1.0):
    # Pure-JAX reference mirroring the PyTorch forward.
    q1 = q1.astype(jnp.float32)
    q2 = q2.astype(jnp.float32)
    q1n = q1 / jnp.maximum(jnp.linalg.norm(q1, axis=1, keepdims=True), 1e-12)
    q2n = q2 / jnp.maximum(jnp.linalg.norm(q2, axis=1, keepdims=True), 1e-12)
    cos = jnp.sum(q1n * q2n, axis=1) / jnp.maximum(
        jnp.linalg.norm(q1n, axis=1) * jnp.linalg.norm(q2n, axis=1), 1e-8)
    d = 1.0 - cos
    pos = labels * d ** 2
    neg = (1.0 - labels) * jnp.maximum(margin - d, 0.0) ** 2
    return jnp.mean(0.5 * (pos + neg))


if __name__ == "__main__":
    key = jax.random.PRNGKey(0)
    k1, k2, k3, k4, k5, k6, k7, k8, k9 = jax.random.split(key, 9)

    # Case 1: small batch, single block, default (auto) tiling.
    B, D = 8, 32
    q1 = jax.random.normal(k1, (B, D), dtype=jnp.float32)
    q2 = jax.random.normal(k2, (B, D), dtype=jnp.float32)
    labels = jax.random.bernoulli(k3, 0.5, (B,)).astype(jnp.float32)

    loss = contrastive_loss(q1, q2, labels, margin=1.0)
    jax.block_until_ready(loss)
    ref = _reference(q1, q2, labels, margin=1.0)
    assert jnp.allclose(loss, ref, atol=1e-5, rtol=1e-5), (loss, ref)

    # Case 2: batch not divisible by the row tile -> multi-block partial sums
    # plus tail-row masking.
    B2, D2 = 20, 32
    q1b = jax.random.normal(k4, (B2, D2), dtype=jnp.float32)
    q2b = jax.random.normal(k5, (B2, D2), dtype=jnp.float32)
    labelsb = jax.random.bernoulli(k6, 0.5, (B2,)).astype(jnp.float32)

    lossb = contrastive_loss(q1b, q2b, labelsb, margin=1.5, block_b=8)
    jax.block_until_ready(lossb)
    refb = _reference(q1b, q2b, labelsb, margin=1.5)
    assert jnp.allclose(lossb, refb, atol=1e-5, rtol=1e-5), (lossb, refb)

    # Case 3: bf16 inputs (16-row sublane alignment path, widened in-kernel).
    B3, D3 = 32, 64
    q1c = jax.random.normal(k7, (B3, D3), dtype=jnp.bfloat16)
    q2c = jax.random.normal(k8, (B3, D3), dtype=jnp.bfloat16)
    labelsc = jax.random.bernoulli(k9, 0.5, (B3,)).astype(jnp.float32)

    lossc = contrastive_loss(q1c, q2c, labelsc, margin=1.0)
    jax.block_until_ready(lossc)
    refc = _reference(q1c, q2c, labelsc, margin=1.0)
    assert jnp.allclose(lossc, refc, atol=1e-5, rtol=1e-5), (lossc, refc)

    print("KERNEL_OK")
</pallas_src>

<mosaic_0001>
module attributes {stable_mosaic.version = 11 : i64} {
  func.func @_contrastive_loss_kernel(%arg0: i32, %arg1: memref<8x32xf32, #tpu.memory_space<vmem>>, %arg2: memref<8x32xf32, #tpu.memory_space<vmem>>, %arg3: memref<8x1xf32, #tpu.memory_space<vmem>>, %arg4: memref<1x1x128xf32, #tpu.memory_space<vmem>>) attributes {dimension_semantics = [#tpu.dimension_semantics<parallel>], iteration_bounds = array<i64: 1>, scalar_prefetch = 0 : i64, scratch_operands = 0 : i64, tpu.core_type = #tpu.core_type<tc>, window_params = [{transform_indices = @transform_0, window_bounds = array<i64: 8, 32>}, {transform_indices = @transform_1, window_bounds = array<i64: 8, 32>}, {transform_indices = @transform_2, window_bounds = array<i64: 8, 1>}, {transform_indices = @transform_3, window_bounds = array<i64: 1, 1, 128>}]} {
    %c0 = arith.constant 0 : index
    %c0_0 = arith.constant 0 : index
    %0 = vector.load %arg1[%c0, %c0_0] : memref<8x32xf32, #tpu.memory_space<vmem>>, vector<8x32xf32>
    %c0_1 = arith.constant 0 : index
    %c0_2 = arith.constant 0 : index
    %1 = vector.load %arg2[%c0_1, %c0_2] : memref<8x32xf32, #tpu.memory_space<vmem>>, vector<8x32xf32>
    %c0_3 = arith.constant 0 : index
    %c0_4 = arith.constant 0 : index
    %2 = vector.load %arg3[%c0_3, %c0_4] : memref<8x1xf32, #tpu.memory_space<vmem>>, vector<8x1xf32>
    %3 = arith.mulf %0, %0 : vector<8x32xf32>
    %cst = arith.constant dense<0.000000e+00> : vector<8xf32>
    %4 = vector.multi_reduction <add>, %3, %cst [1] : vector<8x32xf32> to vector<8xf32>
    %5 = vector.shape_cast %4 : vector<8xf32> to vector<8x1xf32>
    %6 = arith.mulf %1, %1 : vector<8x32xf32>
    %cst_5 = arith.constant dense<0.000000e+00> : vector<8xf32>
    %7 = vector.multi_reduction <add>, %6, %cst_5 [1] : vector<8x32xf32> to vector<8xf32>
    %8 = vector.shape_cast %7 : vector<8xf32> to vector<8x1xf32>
    %9 = arith.mulf %0, %1 : vector<8x32xf32>
    %cst_6 = arith.constant dense<0.000000e+00> : vector<8xf32>
    %10 = vector.multi_reduction <add>, %9, %cst_6 [1] : vector<8x32xf32> to vector<8xf32>
    %11 = vector.shape_cast %10 : vector<8xf32> to vector<8x1xf32>
    %cst_7 = arith.constant 1.000000e-24 : f32
    %12 = vector.broadcast %cst_7 : f32 to vector<8x1xf32>
    %13 = arith.maximumf %5, %12 : vector<8x1xf32>
    %14 = math.rsqrt %13 : vector<8x1xf32>
    %cst_8 = arith.constant 1.000000e-24 : f32
    %15 = vector.broadcast %cst_8 : f32 to vector<8x1xf32>
    %16 = arith.maximumf %8, %15 : vector<8x1xf32>
    %17 = math.rsqrt %16 : vector<8x1xf32>
    %18 = arith.mulf %14, %17 : vector<8x1xf32>
    %19 = arith.mulf %5, %8 : vector<8x1xf32>
    %20 = arith.mulf %19, %18 : vector<8x1xf32>
    %21 = arith.mulf %20, %18 : vector<8x1xf32>
    %22 = arith.mulf %11, %18 : vector<8x1xf32>
    %cst_9 = arith.constant 1.000000e-16 : f32
    %23 = vector.broadcast %cst_9 : f32 to vector<8x1xf32>
    %24 = arith.maximumf %21, %23 : vector<8x1xf32>
    %25 = math.rsqrt %24 : vector<8x1xf32>
    %26 = arith.mulf %22, %25 : vector<8x1xf32>
    %cst_10 = arith.constant 1.000000e+00 : f32
    %27 = vector.broadcast %cst_10 : f32 to vector<8x1xf32>
    %28 = arith.subf %27, %26 : vector<8x1xf32>
    %cst_11 = arith.constant 1.000000e+00 : f32
    %29 = vector.broadcast %cst_11 : f32 to vector<8x1xf32>
    %30 = arith.subf %29, %28 : vector<8x1xf32>
    %cst_12 = arith.constant 0.000000e+00 : f32
    %31 = vector.broadcast %cst_12 : f32 to vector<8x1xf32>
    %32 = arith.maximumf %30, %31 : vector<8x1xf32>
    %33 = arith.mulf %2, %28 : vector<8x1xf32>
    %34 = arith.mulf %33, %28 : vector<8x1xf32>
    %cst_13 = arith.constant 1.000000e+00 : f32
    %35 = vector.broadcast %cst_13 : f32 to vector<8x1xf32>
    %36 = arith.subf %35, %2 : vector<8x1xf32>
    %37 = arith.mulf %36, %32 : vector<8x1xf32>
    %38 = arith.mulf %37, %32 : vector<8x1xf32>
    %39 = arith.addf %34, %38 : vector<8x1xf32>
    %cst_14 = arith.constant 5.000000e-01 : f32
    %40 = vector.broadcast %cst_14 : f32 to vector<8x1xf32>
    %41 = arith.mulf %40, %39 : vector<8x1xf32>
    %42 = vector.shape_cast %41 : vector<8x1xf32> to vector<1x8x1xf32>
    %cst_15 = arith.constant dense<0.000000e+00> : vector<1xf32>
    %43 = vector.multi_reduction <add>, %42, %cst_15 [1, 2] : vector<1x8x1xf32> to vector<1xf32>
    %44 = vector.shape_cast %43 : vector<1xf32> to vector<1x1x1xf32>
    %45 = vector.extract %44[0, 0, 0] : f32 from vector<1x1x1xf32>
    %46 = vector.broadcast %45 : f32 to vector<1x1x128xf32>
    %c0_16 = arith.constant 0 : index
    %c0_17 = arith.constant 0 : index
    %c0_18 = arith.constant 0 : index
    %47 = vector.load %arg4[%c0_16, %c0_17, %c0_18] : memref<1x1x128xf32, #tpu.memory_space<vmem>>, vector<1x1x128xf32>
    tpu.vector_store %arg4[%c0_16, %c0_17, %c0_18], %46 {strides = array<i32>} : memref<1x1x128xf32, #tpu.memory_space<vmem>>, vector<1x1x128xf32>,
    return
  }
  func.func @transform_0(%arg0: i32) -> (i32, i32) {
    %c0_i32 = arith.constant 0 : i32
    %c0_i32_0 = arith.constant 0 : i32
    return %arg0, %c0_i32 : i32, i32
  }
  func.func @transform_1(%arg0: i32) -> (i32, i32) {
    %c0_i32 = arith.constant 0 : i32
    %c0_i32_0 = arith.constant 0 : i32
    return %arg0, %c0_i32 : i32, i32
  }
  func.func @transform_2(%arg0: i32) -> (i32, i32) {
    %c0_i32 = arith.constant 0 : i32
    %c0_i32_0 = arith.constant 0 : i32
    return %arg0, %c0_i32 : i32, i32
  }
  func.func @transform_3(%arg0: i32) -> (i32, i32, i32) {
    %c0_i32 = arith.constant 0 : i32
    %c0_i32_0 = arith.constant 0 : i32
    %c0_i32_1 = arith.constant 0 : i32
    return %arg0, %c0_i32, %c0_i32_0 : i32, i32, i32
  }
}

</mosaic_0001>

<llo_original>
// kernel: tpu_custom_call.1
$region0: #{tpu_custom_call.1}
  #allocation0 [shape = 'u32[]', space=smem, size = 0x4, offset = 0x4, fixed_abs, tag = 'smem constant byte address 0x4 - core index']
  #allocation1 [shape = 'u32[144,128]{1,0:T(1,128)}', space=vmem, size = 0x12000, scoped, tag = 'internal scratch']
  %s0 = inlined_call_operand.vmem [shape: f32[8,32], index: 0, kind: input, shape index: {}]
  %s1 = inlined_call_operand.hbm [shape: f32[8,32], index: 1, kind: input, shape index: {}]
  %s2 = inlined_call_operand.vmem [shape: f32[8,1], index: 2, kind: input, shape index: {}]
  %s3 = inlined_call_operand.hbm [shape: f32[1,1,128], index: 3, kind: output, shape index: {}]
  %s4 = sld [smem:[#allocation0]]
  $region26: #{tpu_custom_call.1} parent=0
    _
  %s6 = ssub.s32 1, %s4
  %s7 = scalar_select 0, %s6, %s4
  $region1: #{tpu_custom_call.1} parent=0
    #allocation2 [shape = 'u8[4096]{0}', space=vmem, size = 0x1000, scoped, tag = 'input window, operand 1, single buffered']
    #allocation3 [shape = 's32[1]{0}', space=sflag, size = 0x4, scoped, tag = 'scoped memory for tpu_custom_call.1']
    #allocation4 [shape = 's32[1]{0}', space=sflag, size = 0x4, scoped, tag = 'scoped memory for tpu_custom_call.1']
    #allocation5 [shape = 'u8[512]{0}', space=vmem, size = 0x400, scoped, tag = 'output window, operand 0, single buffered']
    %8 = vsyncpa [#allocation3], 0
    %9 = vsyncpa [#allocation4], 0
    // Predicated region
    $region2: #{tpu_custom_call.1} parent=1 // pred_check
      _
    $region3: #{tpu_custom_call.1} parent=1 // pred_check_branch
      %11 = sbr.rel (0) target = $region5
    $region4: #{tpu_custom_call.1} parent=1 // pred_region
      _
    $region5: #{tpu_custom_call.1} parent=1 // pred_fallthru
      _
    // Predicated region
    $region6: #{tpu_custom_call.1} parent=1 // pred_check
      _
    $region7: #{tpu_custom_call.1} parent=1 // pred_check_branch
      %13 = sbr.rel (0) target = $region9
    $region8: #{tpu_custom_call.1} parent=1 // pred_region
      %s15 = ssub.s32 128, 128
      %16 = vsyncadd [#allocation3], %s15
      %s18 = sshll.u32 [#allocation2], 4
      %s19 = int_to_ptr.vmem [resolvable:$true] %s18
      %21 = dma.hbm_to_vmem [thread:$0]  %s1, 128, %s19, [#allocation3]
    $region9: #{tpu_custom_call.1} parent=1 // pred_fallthru
      _
    // Predicated region
    $region10: #{tpu_custom_call.1} parent=1 // pred_check
      _
    $region11: #{tpu_custom_call.1} parent=1 // pred_check_branch
      %23 = sbr.rel (0) target = $region13
    $region12: #{tpu_custom_call.1} parent=1 // pred_region
      _
    $region13: #{tpu_custom_call.1} parent=1 // pred_fallthru
      _
    // Predicated region
    $region14: #{tpu_custom_call.1} parent=1 // pred_check
      _
    $region15: #{tpu_custom_call.1} parent=1 // pred_check_branch
      %25 = sbr.rel (0) target = $region17
    $region16: #{tpu_custom_call.1} parent=1 // pred_region
      %26 = dma.done [#allocation3], 128
    $region17: #{tpu_custom_call.1} parent=1 // pred_fallthru
      _
    %v27 = vld [vmem:[%s0] sm:$0xff]
    %v28 = vld [vmem:[#allocation2] sm:$0xff]
    %v29 = vld [vmem:[%s2] sm:$0xff]
    %v30 = vmul.f32 %v27, %v27
    %vm31 = vcmask 261120
    %v32 = vsel %vm31, %v30, 0.0
    %33 = vadd.xlane.f32.xlu0 %v32
    %v34 = vpop.xlane.xlu0 %33
    %v35 = vmul.f32 %v28, %v28
    %v36 = vsel %vm31, %v35, 0.0
    %37 = vadd.xlane.f32.xlu0 %v36
    %v38 = vpop.xlane.xlu0 %37
    %v39 = vmul.f32 %v27, %v28
    %v40 = vsel %vm31, %v39, 0.0
    %41 = vadd.xlane.f32.xlu0 %v40
    %v42 = vpop.xlane.xlu0 %41
    %v43 = vmax.f32 %v34, 1e-24
    %v44 = vrsqrt.pop %v43
    %v45 = vmax.f32 %v38, 1e-24
    %v46 = vrsqrt.pop %v45
    %v47 = vmul.f32 %v44, %v46
    %v48 = vmul.f32 %v34, %v38
    %v49 = vmul.f32 %v48, %v47
    %v50 = vmul.f32 %v49, %v47
    %v51 = vmul.f32 %v42, %v47
    %v52 = vmax.f32 %v50, 1e-16
    %v53 = vrsqrt.pop %v52
    %v54 = vmul.f32 %v51, %v53
    %v55 = vsub.f32 1.0, %v54
    %v56 = vsub.f32 1.0, %v55
    %v57 = vmax.f32 %v56, 0.0
    %v58 = vmul.f32 %v29, %v55
    %v59 = vmul.f32 %v58, %v55
    %v60 = vsub.f32 1.0, %v29
    %v61 = vmul.f32 %v60, %v57
    %v62 = vmul.f32 %v61, %v57
    %v63 = vadd.f32 %v59, %v62
    %v64 = vmul.f32 %v63, 0.5
    %vm65 = vcmask 7168
    %v66 = vsel %vm65, %v64, 0.0
    %67 = vadd.xlane.f32.xlu0 %v66
    %v68 = vpop.xlane.xlu0 %67
    %v69 = vrot.slane %v68, 4
    %v70 = vadd.f32 %v68, %v69
    %v71 = vrot.slane %v70, 2
    %v72 = vadd.f32 %v70, %v71
    %v73 = vrot.slane %v72, 1
    %v74 = vadd.f32 %v72, %v73
    %s75 = vtos %v74
    %v76 = vstv %s75
    %77 = vst [vmem:[#allocation5] sm:$0x1] %v76
    // Predicated region
    $region18: #{tpu_custom_call.1} parent=1 // pred_check
      _
    $region19: #{tpu_custom_call.1} parent=1 // pred_check_branch
      %79 = sbr.rel (0) target = $region21
    $region20: #{tpu_custom_call.1} parent=1 // pred_region
      %s81 = ssub.s32 16, 16
      %82 = vsyncadd [#allocation4], %s81
      %s84 = sshll.u32 [#allocation5], 4
      %s85 = int_to_ptr.vmem [resolvable:$true] %s84
      %87 = dma.vmem_to_hbm [thread:$0]  %s85, 16, %s3, [#allocation4]
    $region21: #{tpu_custom_call.1} parent=1 // pred_fallthru
      _
    // Predicated region
    $region22: #{tpu_custom_call.1} parent=1 // pred_check
      _
    $region23: #{tpu_custom_call.1} parent=1 // pred_check_branch
      %89 = sbr.rel (0) target = $region25
    $region24: #{tpu_custom_call.1} parent=1 // pred_region
      %90 = dma.done [#allocation4], 16
    $region25: #{tpu_custom_call.1} parent=1 // pred_fallthru
      _
    %91 = vsyncpa [#allocation3], 1
    %92 = vsyncpa [#allocation4], 1

</llo_original>
